<compile_context>
chip_gen: v6e
topology: v6e:2x2x1
jax: 0.10.0
libtpu: 0.0.40
codegen_flags: <defaults>
</compile_context>

<pallas_src>
import functools
import math
import re

import jax
import jax.numpy as jnp
from jax.experimental import pallas as pl
from jax.experimental.pallas import tpu as pltpu

EPS = 1e-6
LANE = 128
SUBLANE = 8


def _round_up(x, m):
    return ((x + m - 1) // m) * m


def _tpu_generation():
    try:
        kind = jax.devices()[0].device_kind
    except Exception:
        return None
    m = re.search(r"(\d+)", str(kind))
    return int(m.group(1)) if m else None


def _vmem_capacity_bytes(gen):
    try:
        return int(pltpu.get_tpu_info().vmem_capacity_bytes)
    except Exception:
        if gen is not None and gen >= 7:
            return 64 * 1024 * 1024
        return 128 * 1024 * 1024


# ----------------------------- kernel helpers ------------------------------ #
def _rmsnorm(h, g, d_true):
    # Mean over the TRUE embed dim (padded lanes of h are exactly zero).
    ms = jnp.sum(h * h, axis=-1, keepdims=True) * (1.0 / d_true)
    return h * jax.lax.rsqrt(ms + EPS) * g


def _act_quant(x):
    # BitLinear per-token int8 activation fake-quant (STE forward semantics).
    # TODO(synk): clip range [-128, 127]; canonical BitNet uses [-127, 127] in
    # some variants — verify against the reference module.
    amax = jnp.maximum(jnp.max(jnp.abs(x), axis=-1, keepdims=True), 1e-5)
    inv_amax = pl.reciprocal(amax, approx=True)     # EUP, off the VPU path
    q = jnp.clip(jnp.round(x * (127.0 * inv_amax)), -128.0, 127.0)
    return q * (amax * (1.0 / 127.0))


# --------------------------------- kernel ----------------------------------- #
def _encoder_layer_kernel(x_ref, wqkv_ref, wo_ref, g_ref, w1_ref, w2_ref, o_ref,
                          *, d_true, s_true, mxu_dtype):
    bt, sp, dp = x_ref.shape
    hp = w2_ref.shape[0]
    tokens = bt * sp

    gains = g_ref[...]                       # (2, Dp) f32
    g1 = gains[0:1, :]
    g2 = gains[1:2, :]

    x = x_ref[...].reshape(tokens, dp)       # fold batch tile into token rows
    xm = x.astype(mxu_dtype)

    # ---- self-attention (single head, non-causal); fused QKV matmul ----
    qkv = jnp.dot(xm, wqkv_ref[...], preferred_element_type=jnp.float32)
    qb = qkv[:, 0 * dp:1 * dp].reshape(bt, sp, dp).astype(mxu_dtype)
    kb = qkv[:, 1 * dp:2 * dp].reshape(bt, sp, dp).astype(mxu_dtype)
    vb = qkv[:, 2 * dp:3 * dp].reshape(bt, sp, dp).astype(mxu_dtype)

    # Contraction on the last axis of both operands — no materialized k.T.
    scores = jnp.einsum('bqd,bkd->bqk', qb, kb,
                        preferred_element_type=jnp.float32)
    scores = scores * (1.0 / math.sqrt(d_true))
    if sp > s_true:
        # Padded key positions must get zero probability.
        key_idx = jax.lax.broadcasted_iota(jnp.int32, scores.shape, 2)
        scores = jnp.where(key_idx < s_true, scores, -1e30)
    scores = scores - jnp.max(scores, axis=-1, keepdims=True)
    p = jnp.exp(scores)
    p = p * pl.reciprocal(jnp.sum(p, axis=-1, keepdims=True), approx=True)
    attn = jnp.einsum('bqk,bkd->bqd', p.astype(mxu_dtype), vb,
                      preferred_element_type=jnp.float32)
    attn_out = jnp.dot(attn.reshape(tokens, dp).astype(mxu_dtype), wo_ref[...],
                       preferred_element_type=jnp.float32)

    # ---- residual + RMSNorm1 (post-norm, as in the reference forward) ----
    h = _rmsnorm(x + attn_out, g1, d_true)              # (tokens, Dp) f32

    # ---- BitLinear1 (single fused matmul) + SwiGLU on lane-aligned halves ----
    hq = _act_quant(h).astype(mxu_dtype)
    ff1 = jnp.dot(hq, w1_ref[...], preferred_element_type=jnp.float32)
    val = ff1[:, :hp]
    gate = ff1[:, hp:]
    sw = val * (gate * jax.nn.sigmoid(gate))            # f32 elementwise

    # ---- BitLinear2 ----
    swq = _act_quant(sw).astype(mxu_dtype)
    ff2 = jnp.dot(swq, w2_ref[...], preferred_element_type=jnp.float32)

    # ---- residual + RMSNorm2 ----
    out = _rmsnorm(h + ff2, g2, d_true)
    o_ref[...] = out.reshape(bt, sp, dp).astype(o_ref.dtype)


# --------------------------------- wrapper ----------------------------------- #
def _weight_quant(w):
    # BitLinear ternary weight quantization (data-independent; done once on the
    # UNPADDED weight so the scale matches the reference module).
    scale = 1.0 / jnp.maximum(jnp.mean(jnp.abs(w)), 1e-5)
    return jnp.clip(jnp.round(w * scale), -1.0, 1.0) / scale


def _pad2(a, rows, cols):
    return jnp.pad(a, ((0, rows - a.shape[0]), (0, cols - a.shape[1])))


def _invariant_spec(shape):
    """BlockSpec for a grid-invariant operand: single-buffered (Buffered(1))."""
    idx = lambda b: (0,) * len(shape)
    try:
        return pl.BlockSpec(shape, idx, pipeline_mode=pl.Buffered(1))
    except (TypeError, ValueError):
        # TODO(synk): older jax without pipeline_mode — default double-buffer.
        return pl.BlockSpec(shape, idx)


def transformer_encoder_layer(x, wq, wk, wv, wo, g1, g2, w1, w2,
                              mxu_dtype=jnp.bfloat16):
    B, S, D = x.shape
    H2 = w1.shape[1]
    H = w2.shape[0]
    assert w1.shape[0] == D and w2.shape[1] == D and H2 == 2 * H

    Dp = _round_up(D, LANE)
    Hp = _round_up(H, LANE)
    # Sublane-aligned fold always; lane-dense scores once S is large enough to
    # make padding to 128 cheaper than masked stores on the (S,S) score tile.
    Sp = _round_up(S, LANE) if S >= 64 else _round_up(S, SUBLANE)

    gen = _tpu_generation()
    vmem_cap = _vmem_capacity_bytes(gen)
    itemsize = jnp.dtype(mxu_dtype).itemsize

    # Grid-invariant weight bytes (single-buffered -> counted once).
    w_bytes = (Dp * 3 * Dp + Dp * Dp + Dp * 2 * Hp + Hp * Dp) * itemsize + 2 * Dp * 4

    def step_bytes(bt):
        tok = bt * Sp
        io = 2 * 2 * tok * Dp * 4                               # x + out, 2-buffered
        inter = tok * (8 * Dp + 4 * Hp) * 4 + 2 * bt * Sp * Sp * 4
        mxu_copies = tok * (5 * Dp + 2 * Hp) * itemsize
        return io + inter + mxu_copies

    # ---- batch-tile selection: MXU-friendly M, VMEM-bounded, v7x-aware ----
    target_tokens = 128 if gen == 5 else 256
    b_tile = max(1, min(-(-target_tokens // Sp), B))
    budget = int(0.75 * vmem_cap) - w_bytes
    while b_tile > 1 and step_bytes(b_tile) > budget:
        b_tile = (b_tile + 1) // 2
    if gen is not None and gen >= 7 and b_tile > 1 and _round_up(B, b_tile) // b_tile < 2:
        b_tile = (b_tile + 1) // 2          # keep >= 2 grid steps for 2 TensorCores
    Bp = _round_up(B, b_tile)

    # --- parameter prep (quantize first, then zero-pad to lane-dense dims) ---
    w1q = _weight_quant(w1)
    w2q = _weight_quant(w2)
    w1p = jnp.concatenate([_pad2(w1q[:, :H], Dp, Hp),          # value half
                           _pad2(w1q[:, H:], Dp, Hp)], axis=1  # gate half
                          ).astype(mxu_dtype)                  # (Dp, 2*Hp)
    w2p = _pad2(w2q, Hp, Dp).astype(mxu_dtype)                 # (Hp, Dp)
    wqkv = jnp.concatenate([_pad2(wq, Dp, Dp),
                            _pad2(wk, Dp, Dp),
                            _pad2(wv, Dp, Dp)], axis=1).astype(mxu_dtype)  # (Dp,3Dp)
    wo_p = _pad2(wo, Dp, Dp).astype(mxu_dtype)

    gains = jnp.concatenate(
        [_pad2(g1.reshape(1, -1).astype(jnp.float32), 1, Dp),
         _pad2(g2.reshape(1, -1).astype(jnp.float32), 1, Dp)], axis=0)  # (2,Dp)

    x_p = jnp.pad(x, ((0, Bp - B), (0, Sp - S), (0, Dp - D)))

    # --- generation-aware VMEM limit (no hard 64 MiB clamp on 128 MiB chips) ---
    est = w_bytes + step_bytes(b_tile)
    vmem_limit = int(min(vmem_cap, max(2 * est, 32 * 1024 * 1024)))

    # --- cost estimate so XLA can schedule the surrounding pad/quant ops ---
    tok_total = Bp * Sp
    flops = (2 * tok_total * (3 * Dp * Dp + Dp * Dp + 2 * Dp * Hp + Hp * Dp)
             + 4 * Bp * Sp * Sp * Dp)
    transcendentals = Bp * Sp * Sp + tok_total * (Hp + 4)
    bytes_accessed = (2 * Bp * Sp * Dp * 4
                      + (Dp * 3 * Dp + Dp * Dp + Dp * 2 * Hp + Hp * Dp) * itemsize
                      + 2 * Dp * 4)
    cost = pl.CostEstimate(flops=int(flops),
                           transcendentals=int(transcendentals),
                           bytes_accessed=int(bytes_accessed))

    kernel = functools.partial(_encoder_layer_kernel,
                               d_true=D, s_true=S, mxu_dtype=mxu_dtype)

    grid_spec = pltpu.PrefetchScalarGridSpec(
        num_scalar_prefetch=0,
        grid=(Bp // b_tile,),
        in_specs=[
            pl.BlockSpec((b_tile, Sp, Dp), lambda b: (b, 0, 0)),   # x
            _invariant_spec((Dp, 3 * Dp)),                         # fused wq|wk|wv
            _invariant_spec((Dp, Dp)),                             # wo
            _invariant_spec((2, Dp)),                              # rmsnorm gains
            _invariant_spec((Dp, 2 * Hp)),                         # fused w1 (val|gate)
            _invariant_spec((Hp, Dp)),                             # w2
        ],
        out_specs=pl.BlockSpec((b_tile, Sp, Dp), lambda b: (b, 0, 0)),
    )

    out_p = pl.pallas_call(
        kernel,
        out_shape=jax.ShapeDtypeStruct((Bp, Sp, Dp), x.dtype),
        grid_spec=grid_spec,
        compiler_params=pltpu.CompilerParams(
            dimension_semantics=("parallel",),
            vmem_limit_bytes=vmem_limit),
        cost_estimate=cost,
    )(x_p, wqkv, wo_p, gains, w1p, w2p)

    return out_p[:B, :S, :D]


# ------------------------------ pure-JAX reference ---------------------------- #
def _reference(x, wq, wk, wv, wo, g1, g2, w1, w2):
    D = x.shape[-1]
    H = w2.shape[0]

    def rmsnorm(h, g):
        return h * jax.lax.rsqrt(jnp.mean(h * h, -1, keepdims=True) + EPS) * g

    def act_quant(h):
        amax = jnp.maximum(jnp.max(jnp.abs(h), -1, keepdims=True), 1e-5)
        return jnp.clip(jnp.round(h * 127.0 / amax), -128.0, 127.0) * amax / 127.0

    def wquant(w):
        s = 1.0 / jnp.maximum(jnp.mean(jnp.abs(w)), 1e-5)
        return jnp.clip(jnp.round(w * s), -1.0, 1.0) / s

    q, k, v = x @ wq, x @ wk, x @ wv
    scores = jnp.einsum('bqd,bkd->bqk', q, k) / math.sqrt(D)
    p = jax.nn.softmax(scores, axis=-1)
    attn = jnp.einsum('bqk,bkd->bqd', p, v) @ wo
    h = rmsnorm(x + attn, g1)
    ff = act_quant(h) @ wquant(w1)
    sw = ff[..., :H] * jax.nn.silu(ff[..., H:])
    ff2 = act_quant(sw) @ wquant(w2)
    return rmsnorm(h + ff2, g2)


# ----------------------------------- main ------------------------------------ #
if __name__ == "__main__":
    B, S = 2, 8                 # batch, block_size
    D = 32                      # embed_dim
    F_EXP = 4                   # forward_expansion
    H = F_EXP * D               # ffn hidden (per SwiGLU half)

    key = jax.random.PRNGKey(0)
    ks = jax.random.split(key, 8)

    def init(k, shape, scale=0.02):
        return scale * jax.random.normal(k, shape, dtype=jnp.float32)

    wq = init(ks[0], (D, D))
    wk = init(ks[1], (D, D))
    wv = init(ks[2], (D, D))
    wo = init(ks[3], (D, D))
    g1 = jnp.ones((D,), dtype=jnp.float32)
    g2 = jnp.ones((D,), dtype=jnp.float32)
    w1 = init(ks[4], (D, 2 * H))     # BitLinear1 weight, stored [in, out]
    w2 = init(ks[5], (H, D))         # BitLinear2 weight, stored [in, out]
    x = jax.random.normal(ks[6], (B, S, D), dtype=jnp.float32)

    ref = _reference(x, wq, wk, wv, wo, g1, g2, w1, w2)

    # Bit-conservative path (f32 MXU operands).
    out_f32 = transformer_encoder_layer(x, wq, wk, wv, wo, g1, g2, w1, w2,
                                        mxu_dtype=jnp.float32)
    # Optimized path (bf16 MXU operands, f32 accumulation/elementwise).
    out_bf16 = transformer_encoder_layer(x, wq, wk, wv, wo, g1, g2, w1, w2,
                                         mxu_dtype=jnp.bfloat16)

    # Also exercise the sequence-padding + key-mask path (S=6 -> padded to 8).
    x6 = x[:, :6, :]
    ref6 = _reference(x6, wq, wk, wv, wo, g1, g2, w1, w2)
    out6 = transformer_encoder_layer(x6, wq, wk, wv, wo, g1, g2, w1, w2,
                                     mxu_dtype=jnp.float32)

    jax.block_until_ready((ref, out_f32, out_bf16, ref6, out6))

    assert out_f32.shape == (B, S, D) and out_f32.dtype == jnp.float32
    assert out_bf16.shape == (B, S, D) and out_bf16.dtype == jnp.float32
    assert out6.shape == (B, 6, D)
    assert bool(jnp.all(jnp.isfinite(out_f32)))
    assert bool(jnp.all(jnp.isfinite(out_bf16)))
    assert bool(jnp.all(jnp.isfinite(out6)))
    # Kernel vs pure-JAX reference (loose: approx EUP reciprocals + quant rounding).
    assert float(jnp.max(jnp.abs(out_f32 - ref))) < 5e-2
    assert float(jnp.max(jnp.abs(out6 - ref6))) < 5e-2
    # bf16-MXU path agrees with the reference within bf16-level tolerance.
    assert float(jnp.max(jnp.abs(out_bf16 - ref))) < 0.5
    print("KERNEL_OK")
</pallas_src>

<mosaic_0001>
module attributes {stable_mosaic.version = 11 : i64} {
  func.func @_encoder_layer_kernel(%arg0: i32, %arg1: memref<2x8x128xf32, #tpu.memory_space<vmem>>, %arg2: memref<128x384xf32, #tpu.memory_space<vmem>>, %arg3: memref<128x128xf32, #tpu.memory_space<vmem>>, %arg4: memref<2x128xf32, #tpu.memory_space<vmem>>, %arg5: memref<128x256xf32, #tpu.memory_space<vmem>>, %arg6: memref<128x128xf32, #tpu.memory_space<vmem>>, %arg7: memref<2x8x128xf32, #tpu.memory_space<vmem>>) attributes {dimension_semantics = [#tpu.dimension_semantics<parallel>], iteration_bounds = array<i64: 1>, scalar_prefetch = 0 : i64, scratch_operands = 0 : i64, tpu.core_type = #tpu.core_type<tc>, window_params = [{transform_indices = @transform_0, window_bounds = array<i64: 2, 8, 128>}, {pipeline_mode = #tpu.pipeline_mode<synchronous>, transform_indices = @transform_1, window_bounds = array<i64: 128, 384>}, {pipeline_mode = #tpu.pipeline_mode<synchronous>, transform_indices = @transform_2, window_bounds = array<i64: 128, 128>}, {pipeline_mode = #tpu.pipeline_mode<synchronous>, transform_indices = @transform_3, window_bounds = array<i64: 2, 128>}, {pipeline_mode = #tpu.pipeline_mode<synchronous>, transform_indices = @transform_4, window_bounds = array<i64: 128, 256>}, {pipeline_mode = #tpu.pipeline_mode<synchronous>, transform_indices = @transform_5, window_bounds = array<i64: 128, 128>}, {transform_indices = @transform_6, window_bounds = array<i64: 2, 8, 128>}]} {
    %c0 = arith.constant 0 : index
    %c0_0 = arith.constant 0 : index
    %0 = vector.load %arg4[%c0, %c0_0] : memref<2x128xf32, #tpu.memory_space<vmem>>, vector<2x128xf32>
    %1 = vector.extract_strided_slice %0 {offsets = [0, 0], sizes = [1, 128], strides = [1, 1]} : vector<2x128xf32> to vector<1x128xf32>
    %2 = vector.extract_strided_slice %0 {offsets = [1, 0], sizes = [1, 128], strides = [1, 1]} : vector<2x128xf32> to vector<1x128xf32>
    %c0_1 = arith.constant 0 : index
    %c0_2 = arith.constant 0 : index
    %c0_3 = arith.constant 0 : index
    %3 = vector.load %arg1[%c0_1, %c0_2, %c0_3] : memref<2x8x128xf32, #tpu.memory_space<vmem>>, vector<2x8x128xf32>
    %4 = vector.shape_cast %3 : vector<2x8x128xf32> to vector<16x128xf32>
    %c0_4 = arith.constant 0 : index
    %c0_5 = arith.constant 0 : index
    %5 = vector.load %arg2[%c0_4, %c0_5] : memref<128x384xf32, #tpu.memory_space<vmem>>, vector<128x384xf32>
    %cst = arith.constant dense<0.000000e+00> : vector<16x384xf32>
    %6 = tpu.matmul %4, %5, %cst {dimension_numbers = #tpu.dot_dimension_numbers<[1], [0], [0], [1], [0, 0, 1, 1], [], []>} : vector<16x128xf32>, vector<128x384xf32>, vector<16x384xf32> -> vector<16x384xf32>
    %7 = vector.extract_strided_slice %6 {offsets = [0, 0], sizes = [16, 128], strides = [1, 1]} : vector<16x384xf32> to vector<16x128xf32>
    %8 = vector.shape_cast %7 : vector<16x128xf32> to vector<2x8x128xf32>
    %9 = vector.extract_strided_slice %6 {offsets = [0, 128], sizes = [16, 128], strides = [1, 1]} : vector<16x384xf32> to vector<16x128xf32>
    %10 = vector.shape_cast %9 : vector<16x128xf32> to vector<2x8x128xf32>
    %11 = vector.extract_strided_slice %6 {offsets = [0, 256], sizes = [16, 128], strides = [1, 1]} : vector<16x384xf32> to vector<16x128xf32>
    %12 = vector.shape_cast %11 : vector<16x128xf32> to vector<2x8x128xf32>
    "tpu.trace_start"() <{level = 10 : i32, message = "bqd,bkd->bqk"}> : () -> ()
    %cst_6 = arith.constant dense<0.000000e+00> : vector<2x8x8xf32>
    %13 = tpu.matmul %8, %10, %cst_6 {dimension_numbers = #tpu.dot_dimension_numbers<[2], [2], [1], [1], [0, 0, 0, 1, 1, 1], [0], [0]>} : vector<2x8x128xf32>, vector<2x8x128xf32>, vector<2x8x8xf32> -> vector<2x8x8xf32>
    "tpu.trace_stop"() : () -> ()
    %cst_7 = arith.constant 0.176776692 : f32
    %14 = vector.broadcast %cst_7 : f32 to vector<2x8x8xf32>
    %15 = arith.mulf %13, %14 : vector<2x8x8xf32>
    %cst_8 = arith.constant dense<0xFF800000> : vector<2x8xf32>
    %16 = vector.multi_reduction <maximumf>, %15, %cst_8 [2] : vector<2x8x8xf32> to vector<2x8xf32>
    %17 = vector.shape_cast %16 : vector<2x8xf32> to vector<2x8x1xf32>
    %18 = vector.broadcast %17 : vector<2x8x1xf32> to vector<2x8x8xf32>
    %19 = arith.subf %15, %18 : vector<2x8x8xf32>
    %20 = math.exp %19 : vector<2x8x8xf32>
    %cst_9 = arith.constant dense<0.000000e+00> : vector<2x8xf32>
    %21 = vector.multi_reduction <add>, %20, %cst_9 [2] : vector<2x8x8xf32> to vector<2x8xf32>
    %22 = vector.shape_cast %21 : vector<2x8xf32> to vector<2x8x1xf32>
    %23 = tpu.reciprocal %22 {approx = true} : vector<2x8x1xf32> -> vector<2x8x1xf32>
    %24 = vector.broadcast %23 : vector<2x8x1xf32> to vector<2x8x8xf32>
    %25 = arith.mulf %20, %24 : vector<2x8x8xf32>
    "tpu.trace_start"() <{level = 10 : i32, message = "bqk,bkd->bqd"}> : () -> ()
    %cst_10 = arith.constant dense<0.000000e+00> : vector<2x8x128xf32>
    %26 = tpu.matmul %25, %12, %cst_10 {dimension_numbers = #tpu.dot_dimension_numbers<[2], [1], [1], [2], [0, 0, 0, 1, 1, 2], [0], [0]>} : vector<2x8x8xf32>, vector<2x8x128xf32>, vector<2x8x128xf32> -> vector<2x8x128xf32>
    "tpu.trace_stop"() : () -> ()
    %27 = vector.shape_cast %26 : vector<2x8x128xf32> to vector<16x128xf32>
    %c0_11 = arith.constant 0 : index
    %c0_12 = arith.constant 0 : index
    %28 = vector.load %arg3[%c0_11, %c0_12] : memref<128x128xf32, #tpu.memory_space<vmem>>, vector<128x128xf32>
    %cst_13 = arith.constant dense<0.000000e+00> : vector<16x128xf32>
    %29 = tpu.matmul %27, %28, %cst_13 {dimension_numbers = #tpu.dot_dimension_numbers<[1], [0], [0], [1], [0, 0, 1, 1], [], []>} : vector<16x128xf32>, vector<128x128xf32>, vector<16x128xf32> -> vector<16x128xf32>
    %30 = arith.addf %4, %29 : vector<16x128xf32>
    %31 = arith.mulf %30, %30 : vector<16x128xf32>
    %cst_14 = arith.constant dense<0.000000e+00> : vector<16xf32>
    %32 = vector.multi_reduction <add>, %31, %cst_14 [1] : vector<16x128xf32> to vector<16xf32>
    %33 = vector.shape_cast %32 : vector<16xf32> to vector<16x1xf32>
    %cst_15 = arith.constant 3.125000e-02 : f32
    %34 = vector.broadcast %cst_15 : f32 to vector<16x1xf32>
    %35 = arith.mulf %33, %34 : vector<16x1xf32>
    %cst_16 = arith.constant 9.99999997E-7 : f32
    %36 = vector.broadcast %cst_16 : f32 to vector<16x1xf32>
    %37 = arith.addf %35, %36 : vector<16x1xf32>
    %38 = math.rsqrt %37 : vector<16x1xf32>
    %39 = vector.broadcast %38 : vector<16x1xf32> to vector<16x128xf32>
    %40 = arith.mulf %30, %39 : vector<16x128xf32>
    %41 = vector.broadcast %1 : vector<1x128xf32> to vector<16x128xf32>
    %42 = arith.mulf %40, %41 : vector<16x128xf32>
    %43 = math.absf %42 : vector<16x128xf32>
    %cst_17 = arith.constant dense<0xFF800000> : vector<16xf32>
    %44 = vector.multi_reduction <maximumf>, %43, %cst_17 [1] : vector<16x128xf32> to vector<16xf32>
    %45 = vector.shape_cast %44 : vector<16xf32> to vector<16x1xf32>
    %cst_18 = arith.constant 9.99999974E-6 : f32
    %46 = vector.broadcast %cst_18 : f32 to vector<16x1xf32>
    %47 = arith.maximumf %45, %46 : vector<16x1xf32>
    %48 = tpu.reciprocal %47 {approx = true} : vector<16x1xf32> -> vector<16x1xf32>
    %cst_19 = arith.constant 1.270000e+02 : f32
    %49 = vector.broadcast %cst_19 : f32 to vector<16x1xf32>
    %50 = arith.mulf %49, %48 : vector<16x1xf32>
    %51 = vector.broadcast %50 : vector<16x1xf32> to vector<16x128xf32>
    %52 = arith.mulf %42, %51 : vector<16x128xf32>
    %53 = math.roundeven %52 : vector<16x128xf32>
    %cst_20 = arith.constant -1.280000e+02 : f32
    %cst_21 = arith.constant 1.270000e+02 : f32
    %54 = vector.broadcast %cst_20 : f32 to vector<16x128xf32>
    %55 = arith.maximumf %54, %53 : vector<16x128xf32>
    %56 = vector.broadcast %cst_21 : f32 to vector<16x128xf32>
    %57 = arith.minimumf %56, %55 : vector<16x128xf32>
    %cst_22 = arith.constant 0.00787401571 : f32
    %58 = vector.broadcast %cst_22 : f32 to vector<16x1xf32>
    %59 = arith.mulf %47, %58 : vector<16x1xf32>
    %60 = vector.broadcast %59 : vector<16x1xf32> to vector<16x128xf32>
    %61 = arith.mulf %57, %60 : vector<16x128xf32>
    %c0_23 = arith.constant 0 : index
    %c0_24 = arith.constant 0 : index
    %62 = vector.load %arg5[%c0_23, %c0_24] : memref<128x256xf32, #tpu.memory_space<vmem>>, vector<128x256xf32>
    %cst_25 = arith.constant dense<0.000000e+00> : vector<16x256xf32>
    %63 = tpu.matmul %61, %62, %cst_25 {dimension_numbers = #tpu.dot_dimension_numbers<[1], [0], [0], [1], [0, 0, 1, 1], [], []>} : vector<16x128xf32>, vector<128x256xf32>, vector<16x256xf32> -> vector<16x256xf32>
    %64 = vector.extract_strided_slice %63 {offsets = [0, 0], sizes = [16, 128], strides = [1, 1]} : vector<16x256xf32> to vector<16x128xf32>
    %65 = vector.extract_strided_slice %63 {offsets = [0, 128], sizes = [16, 128], strides = [1, 1]} : vector<16x256xf32> to vector<16x128xf32>
    %66 = arith.negf %65 : vector<16x128xf32>
    %67 = math.exp %66 : vector<16x128xf32>
    %cst_26 = arith.constant 1.000000e+00 : f32
    %68 = vector.broadcast %cst_26 : f32 to vector<16x128xf32>
    %69 = arith.addf %68, %67 : vector<16x128xf32>
    %70 = arith.divf %68, %69 : vector<16x128xf32>
    %71 = arith.mulf %65, %70 : vector<16x128xf32>
    %72 = arith.mulf %64, %71 : vector<16x128xf32>
    %73 = math.absf %72 : vector<16x128xf32>
    %cst_27 = arith.constant dense<0xFF800000> : vector<16xf32>
    %74 = vector.multi_reduction <maximumf>, %73, %cst_27 [1] : vector<16x128xf32> to vector<16xf32>
    %75 = vector.shape_cast %74 : vector<16xf32> to vector<16x1xf32>
    %cst_28 = arith.constant 9.99999974E-6 : f32
    %76 = vector.broadcast %cst_28 : f32 to vector<16x1xf32>
    %77 = arith.maximumf %75, %76 : vector<16x1xf32>
    %78 = tpu.reciprocal %77 {approx = true} : vector<16x1xf32> -> vector<16x1xf32>
    %cst_29 = arith.constant 1.270000e+02 : f32
    %79 = vector.broadcast %cst_29 : f32 to vector<16x1xf32>
    %80 = arith.mulf %79, %78 : vector<16x1xf32>
    %81 = vector.broadcast %80 : vector<16x1xf32> to vector<16x128xf32>
    %82 = arith.mulf %72, %81 : vector<16x128xf32>
    %83 = math.roundeven %82 : vector<16x128xf32>
    %cst_30 = arith.constant -1.280000e+02 : f32
    %cst_31 = arith.constant 1.270000e+02 : f32
    %84 = vector.broadcast %cst_30 : f32 to vector<16x128xf32>
    %85 = arith.maximumf %84, %83 : vector<16x128xf32>
    %86 = vector.broadcast %cst_31 : f32 to vector<16x128xf32>
    %87 = arith.minimumf %86, %85 : vector<16x128xf32>
    %cst_32 = arith.constant 0.00787401571 : f32
    %88 = vector.broadcast %cst_32 : f32 to vector<16x1xf32>
    %89 = arith.mulf %77, %88 : vector<16x1xf32>
    %90 = vector.broadcast %89 : vector<16x1xf32> to vector<16x128xf32>
    %91 = arith.mulf %87, %90 : vector<16x128xf32>
    %c0_33 = arith.constant 0 : index
    %c0_34 = arith.constant 0 : index
    %92 = vector.load %arg6[%c0_33, %c0_34] : memref<128x128xf32, #tpu.memory_space<vmem>>, vector<128x128xf32>
    %cst_35 = arith.constant dense<0.000000e+00> : vector<16x128xf32>
    %93 = tpu.matmul %91, %92, %cst_35 {dimension_numbers = #tpu.dot_dimension_numbers<[1], [0], [0], [1], [0, 0, 1, 1], [], []>} : vector<16x128xf32>, vector<128x128xf32>, vector<16x128xf32> -> vector<16x128xf32>
    %94 = arith.addf %42, %93 : vector<16x128xf32>
    %95 = arith.mulf %94, %94 : vector<16x128xf32>
    %cst_36 = arith.constant dense<0.000000e+00> : vector<16xf32>
    %96 = vector.multi_reduction <add>, %95, %cst_36 [1] : vector<16x128xf32> to vector<16xf32>
    %97 = vector.shape_cast %96 : vector<16xf32> to vector<16x1xf32>
    %cst_37 = arith.constant 3.125000e-02 : f32
    %98 = vector.broadcast %cst_37 : f32 to vector<16x1xf32>
    %99 = arith.mulf %97, %98 : vector<16x1xf32>
    %cst_38 = arith.constant 9.99999997E-7 : f32
    %100 = vector.broadcast %cst_38 : f32 to vector<16x1xf32>
    %101 = arith.addf %99, %100 : vector<16x1xf32>
    %102 = math.rsqrt %101 : vector<16x1xf32>
    %103 = vector.broadcast %102 : vector<16x1xf32> to vector<16x128xf32>
    %104 = arith.mulf %94, %103 : vector<16x128xf32>
    %105 = vector.broadcast %2 : vector<1x128xf32> to vector<16x128xf32>
    %106 = arith.mulf %104, %105 : vector<16x128xf32>
    %107 = vector.shape_cast %106 : vector<16x128xf32> to vector<2x8x128xf32>
    %c0_39 = arith.constant 0 : index
    %c0_40 = arith.constant 0 : index
    %c0_41 = arith.constant 0 : index
    %108 = vector.load %arg7[%c0_39, %c0_40, %c0_41] : memref<2x8x128xf32, #tpu.memory_space<vmem>>, vector<2x8x128xf32>
    tpu.vector_store %arg7[%c0_39, %c0_40, %c0_41], %107 {strides = array<i32>} : memref<2x8x128xf32, #tpu.memory_space<vmem>>, vector<2x8x128xf32>,
    return
  }
  func.func @transform_0(%arg0: i32) -> (i32, i32, i32) {
    %c0_i32 = arith.constant 0 : i32
    %c0_i32_0 = arith.constant 0 : i32
    %c0_i32_1 = arith.constant 0 : i32
    return %arg0, %c0_i32, %c0_i32_0 : i32, i32, i32
  }
  func.func @transform_1(%arg0: i32) -> (i32, i32) {
    %c0_i32 = arith.constant 0 : i32
    %c0_i32_0 = arith.constant 0 : i32
    %c0_i32_1 = arith.constant 0 : i32
    return %c0_i32, %c0_i32_0 : i32, i32
  }
  func.func @transform_2(%arg0: i32) -> (i32, i32) {
    %c0_i32 = arith.constant 0 : i32
    %c0_i32_0 = arith.constant 0 : i32
    %c0_i32_1 = arith.constant 0 : i32
    return %c0_i32, %c0_i32_0 : i32, i32
  }
  func.func @transform_3(%arg0: i32) -> (i32, i32) {
    %c0_i32 = arith.constant 0 : i32
    %c0_i32_0 = arith.constant 0 : i32
    %c0_i32_1 = arith.constant 0 : i32
    return %c0_i32, %c0_i32_0 : i32, i32
  }
  func.func @transform_4(%arg0: i32) -> (i32, i32) {
    %c0_i32 = arith.constant 0 : i32
    %c0_i32_0 = arith.constant 0 : i32
    %c0_i32_1 = arith.constant 0 : i32
    return %c0_i32, %c0_i32_0 : i32, i32
  }
  func.func @transform_5(%arg0: i32) -> (i32, i32) {
    %c0_i32 = arith.constant 0 : i32
    %c0_i32_0 = arith.constant 0 : i32
    %c0_i32_1 = arith.constant 0 : i32
    return %c0_i32, %c0_i32_0 : i32, i32
  }
  func.func @transform_6(%arg0: i32) -> (i32, i32, i32) {
    %c0_i32 = arith.constant 0 : i32
    %c0_i32_0 = arith.constant 0 : i32
    %c0_i32_1 = arith.constant 0 : i32
    return %arg0, %c0_i32, %c0_i32_0 : i32, i32, i32
  }
}

</mosaic_0001>

<llo_original>
// kernel: tpu_custom_call.1
$region0: #{tpu_custom_call.1}
  #allocation0 [shape = 'u32[]', space=smem, size = 0x4, offset = 0x4, fixed_abs, tag = 'smem constant byte address 0x4 - core index']
  #allocation1 [shape = 'u32[144,128]{1,0:T(1,128)}', space=vmem, size = 0x12000, scoped, tag = 'internal scratch']
  %s0 = inlined_call_operand.hbm [shape: f32[2,8,128], index: 0, kind: input, shape index: {}]
  %s1 = inlined_call_operand.hbm [shape: f32[128,384], index: 1, kind: input, shape index: {}]
  %s2 = inlined_call_operand.hbm [shape: f32[128,128], index: 2, kind: input, shape index: {}]
  %s3 = inlined_call_operand.vmem [shape: f32[2,128], index: 3, kind: input, shape index: {}]
  %s4 = inlined_call_operand.hbm [shape: f32[128,256], index: 4, kind: input, shape index: {}]
  %s5 = inlined_call_operand.hbm [shape: f32[128,128], index: 5, kind: input, shape index: {}]
  %s6 = inlined_call_operand.hbm [shape: f32[2,8,128], index: 6, kind: output, shape index: {}]
  %s7 = sld [smem:[#allocation0]]
  $region54: #{tpu_custom_call.1} parent=0
    _
  %s9 = ssub.s32 1, %s7
  %s10 = scalar_select 0, %s9, %s7
  $region1: #{tpu_custom_call.1} parent=0
    #allocation2 [shape = 'u8[8192]{0}', space=vmem, size = 0x2000, scoped, tag = 'input window, operand 0, single buffered']
    #allocation3 [shape = 's32[1]{0}', space=sflag, size = 0x4, scoped, tag = 'scoped memory for tpu_custom_call.1']
    #allocation4 [shape = 's32[1]{0}', space=sflag, size = 0x4, scoped, tag = 'scoped memory for tpu_custom_call.1']
    #allocation5 [shape = 'u8[196608]{0}', space=vmem, size = 0x30000, scoped, tag = 'input window, operand 1, single buffered']
    #allocation6 [shape = 's32[1]{0}', space=sflag, size = 0x4, scoped, tag = 'scoped memory for tpu_custom_call.1']
    #allocation7 [shape = 'u8[65536]{0}', space=vmem, size = 0x10000, scoped, tag = 'input window, operand 2, single buffered']
    #allocation8 [shape = 'u8[131072]{0}', space=vmem, size = 0x20000, scoped, tag = 'input window, operand 4, single buffered']
    #allocation9 [shape = 's32[1]{0}', space=sflag, size = 0x4, scoped, tag = 'scoped memory for tpu_custom_call.1']
    #allocation10 [shape = 'u8[65536]{0}', space=vmem, size = 0x10000, scoped, tag = 'input window, operand 5, single buffered']
    #allocation11 [shape = 'u8[8192]{0}', space=vmem, size = 0x2000, scoped, tag = 'output window, operand 0, single buffered']
    %11 = vsyncpa [#allocation3], 0
    %12 = vsyncpa [#allocation6], 0
    %13 = vsyncpa [#allocation9], 0
    %14 = vsyncpa [#allocation4], 0
    // Predicated region
    $region2: #{tpu_custom_call.1} parent=1 // pred_check
      _
    $region3: #{tpu_custom_call.1} parent=1 // pred_check_branch
      %16 = sbr.rel (0) target = $region5
    $region4: #{tpu_custom_call.1} parent=1 // pred_region
      %s18 = ssub.s32 256, 256
      %19 = vsyncadd [#allocation3], %s18
      %s20 = sshll.u32 [#allocation2], 4
      %s21 = int_to_ptr.vmem [resolvable:$true] %s20
      %26 = dma.hbm_to_vmem [thread:$0]  %s0, 256, %s21, [#allocation3], 128, 128, 8
    $region5: #{tpu_custom_call.1} parent=1 // pred_fallthru
      _
    // Predicated region
    $region6: #{tpu_custom_call.1} parent=1 // pred_check
      _
    $region7: #{tpu_custom_call.1} parent=1 // pred_check_branch
      %28 = sbr.rel (0) target = $region9
    $region8: #{tpu_custom_call.1} parent=1 // pred_region
      %s30 = ssub.s32 6144, 6144
      %31 = vsyncadd [#allocation6], %s30
      %s32 = sshll.u32 [#allocation5], 4
      %s33 = int_to_ptr.vmem [resolvable:$true] %s32
      %38 = dma.hbm_to_vmem [thread:$0]  %s1, 6144, %s33, [#allocation6], 384, 384, 24
    $region9: #{tpu_custom_call.1} parent=1 // pred_fallthru
      _
    // Predicated region
    $region10: #{tpu_custom_call.1} parent=1 // pred_check
      _
    $region11: #{tpu_custom_call.1} parent=1 // pred_check_branch
      %40 = sbr.rel (0) target = $region13
    $region12: #{tpu_custom_call.1} parent=1 // pred_region
      %s42 = ssub.s32 2048, 2048
      %43 = vsyncadd [#allocation6], %s42
      %s44 = sshll.u32 [#allocation7], 4
      %s45 = int_to_ptr.vmem [resolvable:$true] %s44
      %50 = dma.hbm_to_vmem [thread:$0]  %s2, 2048, %s45, [#allocation6], 128, 128, 8
    $region13: #{tpu_custom_call.1} parent=1 // pred_fallthru
      _
    // Predicated region
    $region14: #{tpu_custom_call.1} parent=1 // pred_check
      _
    $region15: #{tpu_custom_call.1} parent=1 // pred_check_branch
      %52 = sbr.rel (0) target = $region17
    $region16: #{tpu_custom_call.1} parent=1 // pred_region
      _
    $region17: #{tpu_custom_call.1} parent=1 // pred_fallthru
      _
    // Predicated region
    $region18: #{tpu_custom_call.1} parent=1 // pred_check
      _
    $region19: #{tpu_custom_call.1} parent=1 // pred_check_branch
      %54 = sbr.rel (0) target = $region21
    $region20: #{tpu_custom_call.1} parent=1 // pred_region
      %s56 = ssub.s32 4096, 4096
      %57 = vsyncadd [#allocation9], %s56
      %s58 = sshll.u32 [#allocation8], 4
      %s59 = int_to_ptr.vmem [resolvable:$true] %s58
      %64 = dma.hbm_to_vmem [thread:$0]  %s4, 4096, %s59, [#allocation9], 256, 256, 16
    $region21: #{tpu_custom_call.1} parent=1 // pred_fallthru
      _
    // Predicated region
    $region22: #{tpu_custom_call.1} parent=1 // pred_check
      _
    $region23: #{tpu_custom_call.1} parent=1 // pred_check_branch
      %66 = sbr.rel (0) target = $region25
    $region24: #{tpu_custom_call.1} parent=1 // pred_region
      %s68 = ssub.s32 2048, 2048
      %69 = vsyncadd [#allocation9], %s68
      %s70 = sshll.u32 [#allocation10], 4
      %s71 = int_to_ptr.vmem [resolvable:$true] %s70
      %76 = dma.hbm_to_vmem [thread:$0]  %s5, 2048, %s71, [#allocation9], 128, 128, 8
    $region25: #{tpu_custom_call.1} parent=1 // pred_fallthru
      _
    // Predicated region
    $region26: #{tpu_custom_call.1} parent=1 // pred_check
      _
    $region27: #{tpu_custom_call.1} parent=1 // pred_check_branch
      %78 = sbr.rel (0) target = $region29
    $region28: #{tpu_custom_call.1} parent=1 // pred_region
      %79 = dma.done [#allocation3], 256
    $region29: #{tpu_custom_call.1} parent=1 // pred_fallthru
      _
    // Predicated region
    $region30: #{tpu_custom_call.1} parent=1 // pred_check
      _
    $region31: #{tpu_custom_call.1} parent=1 // pred_check_branch
      %81 = sbr.rel (0) target = $region33
    $region32: #{tpu_custom_call.1} parent=1 // pred_region
      %82 = dma.done [#allocation6], 6144
    $region33: #{tpu_custom_call.1} parent=1 // pred_fallthru
      _
    // Predicated region
    $region34: #{tpu_custom_call.1} parent=1 // pred_check
      _
    $region35: #{tpu_custom_call.1} parent=1 // pred_check_branch
      %84 = sbr.rel (0) target = $region37
    $region36: #{tpu_custom_call.1} parent=1 // pred_region
      %85 = dma.done [#allocation6], 2048
    $region37: #{tpu_custom_call.1} parent=1 // pred_fallthru
      _
    // Predicated region
    $region38: #{tpu_custom_call.1} parent=1 // pred_check
      _
    $region39: #{tpu_custom_call.1} parent=1 // pred_check_branch
      %87 = sbr.rel (0) target = $region41
    $region40: #{tpu_custom_call.1} parent=1 // pred_region
      %88 = dma.done [#allocation9], 4096
    $region41: #{tpu_custom_call.1} parent=1 // pred_fallthru
      _
    // Predicated region
    $region42: #{tpu_custom_call.1} parent=1 // pred_check
      _
    $region43: #{tpu_custom_call.1} parent=1 // pred_check_branch
      %90 = sbr.rel (0) target = $region45
    $region44: #{tpu_custom_call.1} parent=1 // pred_region
      %91 = dma.done [#allocation9], 2048
    $region45: #{tpu_custom_call.1} parent=1 // pred_fallthru
      _
    %v92 = vld [vmem:[%s3] sm:$0x3]
    %v93 = vld [vmem:[#allocation2] sm:$0xff]
    %v94 = vld [vmem:[#allocation2 + $0x8] sm:$0xff]
    %v95 = vld [vmem:[#allocation5] sm:$0xff]
    %v96 = vld [vmem:[#allocation5 + $0x8] sm:$0xff]
    %v97 = vld [vmem:[#allocation5 + $0x10] sm:$0xff]
    %v98 = vld [vmem:[#allocation5 + $0x18] sm:$0xff]
    %v99 = vld [vmem:[#allocation5 + $0x20] sm:$0xff]
    %v100 = vld [vmem:[#allocation5 + $0x28] sm:$0xff]
    %v101 = vld [vmem:[#allocation5 + $0x30] sm:$0xff]
    %v102 = vld [vmem:[#allocation5 + $0x38] sm:$0xff]
    %v103 = vld [vmem:[#allocation5 + $0x40] sm:$0xff]
    %v104 = vld [vmem:[#allocation5 + $0x48] sm:$0xff]
    %v105 = vld [vmem:[#allocation5 + $0x50] sm:$0xff]
    %v106 = vld [vmem:[#allocation5 + $0x58] sm:$0xff]
    %v107 = vld [vmem:[#allocation5 + $0x60] sm:$0xff]
    %v108 = vld [vmem:[#allocation5 + $0x68] sm:$0xff]
    %v109 = vld [vmem:[#allocation5 + $0x70] sm:$0xff]
    %v110 = vld [vmem:[#allocation5 + $0x78] sm:$0xff]
    %v111 = vld [vmem:[#allocation5 + $0x80] sm:$0xff]
    %v112 = vld [vmem:[#allocation5 + $0x88] sm:$0xff]
    %v113 = vld [vmem:[#allocation5 + $0x90] sm:$0xff]
    %v114 = vld [vmem:[#allocation5 + $0x98] sm:$0xff]
    %v115 = vld [vmem:[#allocation5 + $0xa0] sm:$0xff]
    %v116 = vld [vmem:[#allocation5 + $0xa8] sm:$0xff]
    %v117 = vld [vmem:[#allocation5 + $0xb0] sm:$0xff]
    %v118 = vld [vmem:[#allocation5 + $0xb8] sm:$0xff]
    %v119 = vld [vmem:[#allocation5 + $0xc0] sm:$0xff]
    %v120 = vld [vmem:[#allocation5 + $0xc8] sm:$0xff]
    %v121 = vld [vmem:[#allocation5 + $0xd0] sm:$0xff]
    %v122 = vld [vmem:[#allocation5 + $0xd8] sm:$0xff]
    %v123 = vld [vmem:[#allocation5 + $0xe0] sm:$0xff]
    %v124 = vld [vmem:[#allocation5 + $0xe8] sm:$0xff]
    %v125 = vld [vmem:[#allocation5 + $0xf0] sm:$0xff]
    %v126 = vld [vmem:[#allocation5 + $0xf8] sm:$0xff]
    %v127 = vld [vmem:[#allocation5 + $0x100] sm:$0xff]
    %v128 = vld [vmem:[#allocation5 + $0x108] sm:$0xff]
    %v129 = vld [vmem:[#allocation5 + $0x110] sm:$0xff]
    %v130 = vld [vmem:[#allocation5 + $0x118] sm:$0xff]
    %v131 = vld [vmem:[#allocation5 + $0x120] sm:$0xff]
    %v132 = vld [vmem:[#allocation5 + $0x128] sm:$0xff]
    %v133 = vld [vmem:[#allocation5 + $0x130] sm:$0xff]
    %v134 = vld [vmem:[#allocation5 + $0x138] sm:$0xff]
    %v135 = vld [vmem:[#allocation5 + $0x140] sm:$0xff]
    %v136 = vld [vmem:[#allocation5 + $0x148] sm:$0xff]
    %v137 = vld [vmem:[#allocation5 + $0x150] sm:$0xff]
    %v138 = vld [vmem:[#allocation5 + $0x158] sm:$0xff]
    %v139 = vld [vmem:[#allocation5 + $0x160] sm:$0xff]
    %v140 = vld [vmem:[#allocation5 + $0x168] sm:$0xff]
    %v141 = vld [vmem:[#allocation5 + $0x170] sm:$0xff]
    %v142 = vld [vmem:[#allocation5 + $0x178] sm:$0xff]
    %143 = vmatprep.subr.mxu0 %v141
    %144 = vmatpush1.msra.mxu0 %v140
    %145 = vmatprep.subr.mxu0 %v138
    %146 = vmatpush1.msra.mxu0 %v137
    %147 = vmatprep.subr.mxu0 %v135
    %148 = vmatpush1.msra.mxu0 %v134
    %149 = vmatprep.subr.mxu0 %v132
    %150 = vmatpush1.msra.mxu0 %v131
    %151 = vmatprep.subr.mxu0 %v129
    %152 = vmatpush1.msra.mxu0 %v128
    %153 = vmatprep.subr.mxu0 %v126
    %154 = vmatpush1.msra.mxu0 %v125
    %155 = vmatprep.subr.mxu0 %v123
    %156 = vmatpush1.msra.mxu0 %v122
    %157 = vmatprep.subr.mxu0 %v120
    %158 = vmatpush1.msra.mxu0 %v119
    %159 = vmatprep.subr.mxu0 %v117
    %160 = vmatpush1.msra.mxu0 %v116
    %161 = vmatprep.subr.mxu0 %v114
    %162 = vmatpush1.msra.mxu0 %v113
    %163 = vmatprep.subr.mxu0 %v111
    %164 = vmatpush1.msra.mxu0 %v110
    %165 = vmatprep.subr.mxu0 %v108
    %166 = vmatpush1.msra.mxu0 %v107
    %167 = vmatprep.subr.mxu0 %v105
    %168 = vmatpush1.msra.mxu0 %v104
    %169 = vmatprep.subr.mxu0 %v102
    %170 = vmatpush1.msra.mxu0 %v101
    %171 = vmatprep.subr.mxu0 %v99
    %172 = vmatpush1.msra.mxu0 %v98
    %173 = vmatprep.subr.mxu0 %v96
    %174 = vmatpush1.msra.mxu0 %v95
    %175 = vmatprep.subr.mxu0 0.0
    %176 = vmatpush2.msra.mxu0 0.0
    %177 = vmatprep.subr.mxu0 0.0
    %178 = vmatpush2.msra.mxu0 0.0
    %179 = vmatprep.subr.mxu0 0.0
    %180 = vmatpush2.msra.mxu0 0.0
    %181 = vmatprep.subr.mxu0 0.0
    %182 = vmatpush2.msra.mxu0 0.0
    %183 = vmatprep.subr.mxu0 0.0
    %184 = vmatpush2.msra.mxu0 0.0
    %185 = vmatprep.subr.mxu0 0.0
    %186 = vmatpush2.msra.mxu0 0.0
    %187 = vmatprep.subr.mxu0 0.0
    %188 = vmatpush2.msra.mxu0 0.0
    %189 = vmatprep.subr.mxu0 0.0
    %190 = vmatpush2.msra.mxu0 0.0
    %191 = vmatprep.subr.mxu0 0.0
    %192 = vmatpush2.msra.mxu0 0.0
    %193 = vmatprep.subr.mxu0 0.0
    %194 = vmatpush2.msra.mxu0 0.0
    %195 = vmatprep.subr.mxu0 0.0
    %196 = vmatpush2.msra.mxu0 0.0
    %197 = vmatprep.subr.mxu0 0.0
    %198 = vmatpush2.msra.mxu0 0.0
    %199 = vmatprep.subr.mxu0 0.0
    %200 = vmatpush2.msra.mxu0 0.0
    %201 = vmatprep.subr.mxu0 0.0
    %202 = vmatpush2.msra.mxu0 0.0
    %203 = vmatprep.subr.mxu0 0.0
    %204 = vmatpush2.msra.mxu0 0.0
    %205 = vmatprep.subr.mxu0 0.0
    %206 = vmatpush2.msra.mxu0 0.0
    %207 = vmatprep.mubr.f32.mxu0 0.0
    %208 = vmatmul.mubr.f32.gmra.mxu0 %v93
    %v209 = vpop.f32.mrf.mxu0
    %v210 = vadd.f32 0.0, %v209
    %v211 = vpop.f32.mrf.mxu0
    %v212 = vadd.f32 0.0, %v211
    %213 = vmatprep.mubr.f32.mxu0 0.0
    %214 = vmatmul.mubr.f32.gmra.mxu0 %v94
    %v215 = vpop.f32.mrf.mxu0
    %v216 = vadd.f32 0.0, %v215
    %v217 = vpop.f32.mrf.mxu0
    %v218 = vadd.f32 0.0, %v217
    %219 = vdwg.mxu0
    %220 = vmatprep.subr.mxu0 0.0
    %221 = vmatpush1.msra.mxu0 %v142
    %222 = vmatprep.subr.mxu0 0.0
    %223 = vmatpush1.msra.mxu0 %v139
    %224 = vmatprep.subr.mxu0 0.0
    %225 = vmatpush1.msra.mxu0 %v136
    %226 = vmatprep.subr.mxu0 0.0
    %227 = vmatpush1.msra.mxu0 %v133
    %228 = vmatprep.subr.mxu0 0.0
    %229 = vmatpush1.msra.mxu0 %v130
    %230 = vmatprep.subr.mxu0 0.0
    %231 = vmatpush1.msra.mxu0 %v127
    %232 = vmatprep.subr.mxu0 0.0
    %233 = vmatpush1.msra.mxu0 %v124
    %234 = vmatprep.subr.mxu0 0.0
    %235 = vmatpush1.msra.mxu0 %v121
    %236 = vmatprep.subr.mxu0 0.0
    %237 = vmatpush1.msra.mxu0 %v118
    %238 = vmatprep.subr.mxu0 0.0
    %239 = vmatpush1.msra.mxu0 %v115
    %240 = vmatprep.subr.mxu0 0.0
    %241 = vmatpush1.msra.mxu0 %v112
    %242 = vmatprep.subr.mxu0 0.0
    %243 = vmatpush1.msra.mxu0 %v109
    %244 = vmatprep.subr.mxu0 0.0
    %245 = vmatpush1.msra.mxu0 %v106
    %246 = vmatprep.subr.mxu0 0.0
    %247 = vmatpush1.msra.mxu0 %v103
    %248 = vmatprep.subr.mxu0 0.0
    %249 = vmatpush1.msra.mxu0 %v100
    %250 = vmatprep.subr.mxu0 0.0
    %251 = vmatpush1.msra.mxu0 %v97
    %252 = vmatprep.subr.mxu0 0.0
    %253 = vmatpush2.msra.mxu0 0.0
    %254 = vmatprep.subr.mxu0 0.0
    %255 = vmatpush2.msra.mxu0 0.0
    %256 = vmatprep.subr.mxu0 0.0
    %257 = vmatpush2.msra.mxu0 0.0
    %258 = vmatprep.subr.mxu0 0.0
    %259 = vmatpush2.msra.mxu0 0.0
    %260 = vmatprep.subr.mxu0 0.0
    %261 = vmatpush2.msra.mxu0 0.0
    %262 = vmatprep.subr.mxu0 0.0
    %263 = vmatpush2.msra.mxu0 0.0
    %264 = vmatprep.subr.mxu0 0.0
    %265 = vmatpush2.msra.mxu0 0.0
    %266 = vmatprep.subr.mxu0 0.0
    %267 = vmatpush2.msra.mxu0 0.0
    %268 = vmatprep.subr.mxu0 0.0
    %269 = vmatpush2.msra.mxu0 0.0
    %270 = vmatprep.subr.mxu0 0.0
    %271 = vmatpush2.msra.mxu0 0.0
    %272 = vmatprep.subr.mxu0 0.0
    %273 = vmatpush2.msra.mxu0 0.0
    %274 = vmatprep.subr.mxu0 0.0
    %275 = vmatpush2.msra.mxu0 0.0
    %276 = vmatprep.subr.mxu0 0.0
    %277 = vmatpush2.msra.mxu0 0.0
    %278 = vmatprep.subr.mxu0 0.0
    %279 = vmatpush2.msra.mxu0 0.0
    %280 = vmatprep.subr.mxu0 0.0
    %281 = vmatpush2.msra.mxu0 0.0
    %282 = vmatprep.subr.mxu0 0.0
    %283 = vmatpush2.msra.mxu0 0.0
    %284 = vmatprep.mubr.f32.mxu0 0.0
    %285 = vmatmul.mubr.f32.gmra.mxu0 %v93
    %v286 = vpop.f32.mrf.mxu0
    %v287 = vadd.f32 0.0, %v286
    %v288 = vpop.f32.mrf.mxu0
    %289 = vmatprep.mubr.f32.mxu0 0.0
    %290 = vmatmul.mubr.f32.gmra.mxu0 %v94
    %v291 = vpop.f32.mrf.mxu0
    %v292 = vadd.f32 0.0, %v291
    %v293 = vpop.f32.mrf.mxu0
    %294 = vdwg.mxu0
    %295 = vmatprep.subr.mxu0 0.0
    %296 = vmatpush1.xpose.msra.mxu0 0.0
    %297 = vmatprep.subr.mxu0 0.0
    %298 = vmatpush1.xpose.msra.mxu0 0.0
    %299 = vmatprep.subr.mxu0 0.0
    %300 = vmatpush1.xpose.msra.mxu0 0.0
    %301 = vmatprep.subr.mxu0 0.0
    %302 = vmatpush1.xpose.msra.mxu0 0.0
    %303 = vmatprep.subr.mxu0 0.0
    %304 = vmatpush1.xpose.msra.mxu0 0.0
    %305 = vmatprep.subr.mxu0 0.0
    %306 = vmatpush1.xpose.msra.mxu0 0.0
    %307 = vmatprep.subr.mxu0 0.0
    %308 = vmatpush1.xpose.msra.mxu0 0.0
    %309 = vmatprep.subr.mxu0 0.0
    %310 = vmatpush1.xpose.msra.mxu0 0.0
    %311 = vmatprep.subr.mxu0 0.0
    %312 = vmatpush1.xpose.msra.mxu0 0.0
    %313 = vmatprep.subr.mxu0 0.0
    %314 = vmatpush1.xpose.msra.mxu0 0.0
    %315 = vmatprep.subr.mxu0 0.0
    %316 = vmatpush1.xpose.msra.mxu0 0.0
    %317 = vmatprep.subr.mxu0 0.0
    %318 = vmatpush1.xpose.msra.mxu0 0.0
    %319 = vmatprep.subr.mxu0 0.0
    %320 = vmatpush1.xpose.msra.mxu0 0.0
    %321 = vmatprep.subr.mxu0 0.0
    %322 = vmatpush1.xpose.msra.mxu0 0.0
    %323 = vmatprep.subr.mxu0 0.0
    %324 = vmatpush1.xpose.msra.mxu0 0.0
    %325 = vmatprep.subr.mxu0 0.0
    %326 = vmatpush1.xpose.msra.mxu0 %v212
    %327 = vmatprep.subr.mxu0 0.0
    %328 = vmatpush2.xpose.msra.mxu0 0.0
    %329 = vmatprep.subr.mxu0 0.0
    %330 = vmatpush2.xpose.msra.mxu0 0.0
    %331 = vmatprep.subr.mxu0 0.0
    %332 = vmatpush2.xpose.msra.mxu0 0.0
    %333 = vmatprep.subr.mxu0 0.0
    %334 = vmatpush2.xpose.msra.mxu0 0.0
    %335 = vmatprep.subr.mxu0 0.0
    %336 = vmatpush2.xpose.msra.mxu0 0.0
    %337 = vmatprep.subr.mxu0 0.0
    %338 = vmatpush2.xpose.msra.mxu0 0.0
    %339 = vmatprep.subr.mxu0 0.0
    %340 = vmatpush2.xpose.msra.mxu0 0.0
    %341 = vmatprep.subr.mxu0 0.0
    %342 = vmatpush2.xpose.msra.mxu0 0.0
    %343 = vmatprep.subr.mxu0 0.0
    %344 = vmatpush2.xpose.msra.mxu0 0.0
    %345 = vmatprep.subr.mxu0 0.0
    %346 = vmatpush2.xpose.msra.mxu0 0.0
    %347 = vmatprep.subr.mxu0 0.0
    %348 = vmatpush2.xpose.msra.mxu0 0.0
    %349 = vmatprep.subr.mxu0 0.0
    %350 = vmatpush2.xpose.msra.mxu0 0.0
    %351 = vmatprep.subr.mxu0 0.0
    %352 = vmatpush2.xpose.msra.mxu0 0.0
    %353 = vmatprep.subr.mxu0 0.0
    %354 = vmatpush2.xpose.msra.mxu0 0.0
    %355 = vmatprep.subr.mxu0 0.0
    %356 = vmatpush2.xpose.msra.mxu0 0.0
    %357 = vmatprep.subr.mxu0 0.0
    %358 = vmatpush2.xpose.msra.mxu0 0.0
    %359 = vmatprep.mubr.f32.mxu0 0.0
    %360 = vmatmul.mubr.f32.gmra.mxu0 %v210
    %v361 = vpop.f32.mrf.mxu0
    %v362 = vadd.f32 0.0, %v361
    %v363 = vpop.f32.mrf.mxu0
    %364 = vdwg.mxu0
    %365 = vmatprep.subr.mxu0 0.0
    %366 = vmatpush1.xpose.msra.mxu0 0.0
    %367 = vmatprep.subr.mxu0 0.0
    %368 = vmatpush1.xpose.msra.mxu0 0.0
    %369 = vmatprep.subr.mxu0 0.0
    %370 = vmatpush1.xpose.msra.mxu0 0.0
    %371 = vmatprep.subr.mxu0 0.0
    %372 = vmatpush1.xpose.msra.mxu0 0.0
    %373 = vmatprep.subr.mxu0 0.0
    %374 = vmatpush1.xpose.msra.mxu0 0.0
    %375 = vmatprep.subr.mxu0 0.0
    %376 = vmatpush1.xpose.msra.mxu0 0.0
    %377 = vmatprep.subr.mxu0 0.0
    %378 = vmatpush1.xpose.msra.mxu0 0.0
    %379 = vmatprep.subr.mxu0 0.0
    %380 = vmatpush1.xpose.msra.mxu0 0.0
    %381 = vmatprep.subr.mxu0 0.0
    %382 = vmatpush1.xpose.msra.mxu0 0.0
    %383 = vmatprep.subr.mxu0 0.0
    %384 = vmatpush1.xpose.msra.mxu0 0.0
    %385 = vmatprep.subr.mxu0 0.0
    %386 = vmatpush1.xpose.msra.mxu0 0.0
    %387 = vmatprep.subr.mxu0 0.0
    %388 = vmatpush1.xpose.msra.mxu0 0.0
    %389 = vmatprep.subr.mxu0 0.0
    %390 = vmatpush1.xpose.msra.mxu0 0.0
    %391 = vmatprep.subr.mxu0 0.0
    %392 = vmatpush1.xpose.msra.mxu0 0.0
    %393 = vmatprep.subr.mxu0 0.0
    %394 = vmatpush1.xpose.msra.mxu0 0.0
    %395 = vmatprep.subr.mxu0 0.0
    %396 = vmatpush1.xpose.msra.mxu0 %v218
    %397 = vmatprep.subr.mxu0 0.0
    %398 = vmatpush2.xpose.msra.mxu0 0.0
    %399 = vmatprep.subr.mxu0 0.0
    %400 = vmatpush2.xpose.msra.mxu0 0.0
    %401 = vmatprep.subr.mxu0 0.0
    %402 = vmatpush2.xpose.msra.mxu0 0.0
    %403 = vmatprep.subr.mxu0 0.0
    %404 = vmatpush2.xpose.msra.mxu0 0.0
    %405 = vmatprep.subr.mxu0 0.0
    %406 = vmatpush2.xpose.msra.mxu0 0.0
    %407 = vmatprep.subr.mxu0 0.0
    %408 = vmatpush2.xpose.msra.mxu0 0.0
    %409 = vmatprep.subr.mxu0 0.0
    %410 = vmatpush2.xpose.msra.mxu0 0.0
    %411 = vmatprep.subr.mxu0 0.0
    %412 = vmatpush2.xpose.msra.mxu0 0.0
    %413 = vmatprep.subr.mxu0 0.0
    %414 = vmatpush2.xpose.msra.mxu0 0.0
    %415 = vmatprep.subr.mxu0 0.0
    %416 = vmatpush2.xpose.msra.mxu0 0.0
    %417 = vmatprep.subr.mxu0 0.0
    %418 = vmatpush2.xpose.msra.mxu0 0.0
    %419 = vmatprep.subr.mxu0 0.0
    %420 = vmatpush2.xpose.msra.mxu0 0.0
    %421 = vmatprep.subr.mxu0 0.0
    %422 = vmatpush2.xpose.msra.mxu0 0.0
    %423 = vmatprep.subr.mxu0 0.0
    %424 = vmatpush2.xpose.msra.mxu0 0.0
    %425 = vmatprep.subr.mxu0 0.0
    %426 = vmatpush2.xpose.msra.mxu0 0.0
    %427 = vmatprep.subr.mxu0 0.0
    %428 = vmatpush2.xpose.msra.mxu0 0.0
    %429 = vmatprep.mubr.f32.mxu0 0.0
    %430 = vmatmul.mubr.f32.gmra.mxu0 %v216
    %v431 = vpop.f32.mrf.mxu0
    %v432 = vadd.f32 0.0, %v431
    %v433 = vpop.f32.mrf.mxu0
    %434 = vdwg.mxu0
    %v435 = vmul.f32 %v362, 0.17677669
    %v436 = vmul.f32 %v432, 0.17677669
    %vm437 = vcmask 64512
    %v438 = vsel %vm437, %v435, -inf
    %439 = vmax.xlane.f32.xlu0 %v438
    %v440 = vpop.xlane.xlu0 %439
    %v441 = vsel %vm437, %v436, -inf
    %442 = vmax.xlane.f32.xlu0 %v441
    %v443 = vpop.xlane.xlu0 %442
    %v444 = vsub.f32 %v435, %v440
    %v445 = vsub.f32 %v436, %v443
    %v446 = vmul.f32 %v444, 1.442695
    %v447 = vpow.pop %v446
    %v448 = vmul.f32 %v445, 1.442695
    %v449 = vpow.pop %v448
    %v450 = vsel %vm437, %v447, 0.0
    %451 = vadd.xlane.f32.xlu0 %v450
    %v452 = vpop.xlane.xlu0 %451
    %v453 = vsel %vm437, %v449, 0.0
    %454 = vadd.xlane.f32.xlu0 %v453
    %v455 = vpop.xlane.xlu0 %454
    %v456 = vrcp.pop %v452
    %v457 = vrcp.pop %v455
    %v458 = vmul.f32 %v447, %v456
    %v459 = vmul.f32 %v449, %v457
    %v461 = vsel %vm437, %v458, 0
    %463 = vmatprep.subr.mxu0 0.0
    %464 = vmatpush1.msra.mxu0 0.0
    %465 = vmatprep.subr.mxu0 0.0
    %466 = vmatpush1.msra.mxu0 0.0
    %467 = vmatprep.subr.mxu0 0.0
    %468 = vmatpush1.msra.mxu0 0.0
    %469 = vmatprep.subr.mxu0 0.0
    %470 = vmatpush1.msra.mxu0 0.0
    %471 = vmatprep.subr.mxu0 0.0
    %472 = vmatpush1.msra.mxu0 0.0
    %473 = vmatprep.subr.mxu0 0.0
    %474 = vmatpush1.msra.mxu0 0.0
    %475 = vmatprep.subr.mxu0 0.0
    %476 = vmatpush1.msra.mxu0 0.0
    %477 = vmatprep.subr.mxu0 0.0
    %478 = vmatpush1.msra.mxu0 0.0
    %479 = vmatprep.subr.mxu0 0.0
    %480 = vmatpush1.msra.mxu0 0.0
    %481 = vmatprep.subr.mxu0 0.0
    %482 = vmatpush1.msra.mxu0 0.0
    %483 = vmatprep.subr.mxu0 0.0
    %484 = vmatpush1.msra.mxu0 0.0
    %485 = vmatprep.subr.mxu0 0.0
    %486 = vmatpush1.msra.mxu0 0.0
    %487 = vmatprep.subr.mxu0 0.0
    %488 = vmatpush1.msra.mxu0 0.0
    %489 = vmatprep.subr.mxu0 0.0
    %490 = vmatpush1.msra.mxu0 0.0
    %491 = vmatprep.subr.mxu0 0.0
    %492 = vmatpush1.msra.mxu0 0.0
    %493 = vmatprep.subr.mxu0 0.0
    %494 = vmatpush1.msra.mxu0 %v287
    %495 = vmatprep.subr.mxu0 0.0
    %496 = vmatpush2.msra.mxu0 0.0
    %497 = vmatprep.subr.mxu0 0.0
    %498 = vmatpush2.msra.mxu0 0.0
    %499 = vmatprep.subr.mxu0 0.0
    %500 = vmatpush2.msra.mxu0 0.0
    %501 = vmatprep.subr.mxu0 0.0
    %502 = vmatpush2.msra.mxu0 0.0
    %503 = vmatprep.subr.mxu0 0.0
    %504 = vmatpush2.msra.mxu0 0.0
    %505 = vmatprep.subr.mxu0 0.0
    %506 = vmatpush2.msra.mxu0 0.0
    %507 = vmatprep.subr.mxu0 0.0
    %508 = vmatpush2.msra.mxu0 0.0
    %509 = vmatprep.subr.mxu0 0.0
    %510 = vmatpush2.msra.mxu0 0.0
    %511 = vmatprep.subr.mxu0 0.0
    %512 = vmatpush2.msra.mxu0 0.0
    %513 = vmatprep.subr.mxu0 0.0
    %514 = vmatpush2.msra.mxu0 0.0
    %515 = vmatprep.subr.mxu0 0.0
    %516 = vmatpush2.msra.mxu0 0.0
    %517 = vmatprep.subr.mxu0 0.0
    %518 = vmatpush2.msra.mxu0 0.0
    %519 = vmatprep.subr.mxu0 0.0
    %520 = vmatpush2.msra.mxu0 0.0
    %521 = vmatprep.subr.mxu0 0.0
    %522 = vmatpush2.msra.mxu0 0.0
    %523 = vmatprep.subr.mxu0 0.0
    %524 = vmatpush2.msra.mxu0 0.0
    %525 = vmatprep.subr.mxu0 0.0
    %526 = vmatpush2.msra.mxu0 0.0
    %527 = vmatprep.mubr.f32.mxu0 0.0
    %528 = vmatmul.mubr.f32.gmra.mxu0 %v461
    %v529 = vpop.f32.mrf.mxu0
    %v530 = vadd.f32 0.0, %v529
    %v531 = vpop.f32.mrf.mxu0
    %532 = vdwg.mxu0
    %v534 = vsel %vm437, %v459, 0
    %536 = vmatprep.subr.mxu0 0.0
    %537 = vmatpush1.msra.mxu0 0.0
    %538 = vmatprep.subr.mxu0 0.0
    %539 = vmatpush1.msra.mxu0 0.0
    %540 = vmatprep.subr.mxu0 0.0
    %541 = vmatpush1.msra.mxu0 0.0
    %542 = vmatprep.subr.mxu0 0.0
    %543 = vmatpush1.msra.mxu0 0.0
    %544 = vmatprep.subr.mxu0 0.0
    %545 = vmatpush1.msra.mxu0 0.0
    %546 = vmatprep.subr.mxu0 0.0
    %547 = vmatpush1.msra.mxu0 0.0
    %548 = vmatprep.subr.mxu0 0.0
    %549 = vmatpush1.msra.mxu0 0.0
    %550 = vmatprep.subr.mxu0 0.0
    %551 = vmatpush1.msra.mxu0 0.0
    %552 = vmatprep.subr.mxu0 0.0
    %553 = vmatpush1.msra.mxu0 0.0
    %554 = vmatprep.subr.mxu0 0.0
    %555 = vmatpush1.msra.mxu0 0.0
    %556 = vmatprep.subr.mxu0 0.0
    %557 = vmatpush1.msra.mxu0 0.0
    %558 = vmatprep.subr.mxu0 0.0
    %559 = vmatpush1.msra.mxu0 0.0
    %560 = vmatprep.subr.mxu0 0.0
    %561 = vmatpush1.msra.mxu0 0.0
    %562 = vmatprep.subr.mxu0 0.0
    %563 = vmatpush1.msra.mxu0 0.0
    %564 = vmatprep.subr.mxu0 0.0
    %565 = vmatpush1.msra.mxu0 0.0
    %566 = vmatprep.subr.mxu0 0.0
    %567 = vmatpush1.msra.mxu0 %v292
    %568 = vmatprep.subr.mxu0 0.0
    %569 = vmatpush2.msra.mxu0 0.0
    %570 = vmatprep.subr.mxu0 0.0
    %571 = vmatpush2.msra.mxu0 0.0
    %572 = vmatprep.subr.mxu0 0.0
    %573 = vmatpush2.msra.mxu0 0.0
    %574 = vmatprep.subr.mxu0 0.0
    %575 = vmatpush2.msra.mxu0 0.0
    %576 = vmatprep.subr.mxu0 0.0
    %577 = vmatpush2.msra.mxu0 0.0
    %578 = vmatprep.subr.mxu0 0.0
    %579 = vmatpush2.msra.mxu0 0.0
    %580 = vmatprep.subr.mxu0 0.0
    %581 = vmatpush2.msra.mxu0 0.0
    %582 = vmatprep.subr.mxu0 0.0
    %583 = vmatpush2.msra.mxu0 0.0
    %584 = vmatprep.subr.mxu0 0.0
    %585 = vmatpush2.msra.mxu0 0.0
    %586 = vmatprep.subr.mxu0 0.0
    %587 = vmatpush2.msra.mxu0 0.0
    %588 = vmatprep.subr.mxu0 0.0
    %589 = vmatpush2.msra.mxu0 0.0
    %590 = vmatprep.subr.mxu0 0.0
    %591 = vmatpush2.msra.mxu0 0.0
    %592 = vmatprep.subr.mxu0 0.0
    %593 = vmatpush2.msra.mxu0 0.0
    %594 = vmatprep.subr.mxu0 0.0
    %595 = vmatpush2.msra.mxu0 0.0
    %596 = vmatprep.subr.mxu0 0.0
    %597 = vmatpush2.msra.mxu0 0.0
    %598 = vmatprep.subr.mxu0 0.0
    %599 = vmatpush2.msra.mxu0 0.0
    %600 = vmatprep.mubr.f32.mxu0 0.0
    %601 = vmatmul.mubr.f32.gmra.mxu0 %v534
    %v602 = vpop.f32.mrf.mxu0
    %v603 = vadd.f32 0.0, %v602
    %v604 = vpop.f32.mrf.mxu0
    %605 = vdwg.mxu0
    %v606 = vld [vmem:[#allocation7] sm:$0xff]
    %v607 = vld [vmem:[#allocation7 + $0x8] sm:$0xff]
    %v608 = vld [vmem:[#allocation7 + $0x10] sm:$0xff]
    %v609 = vld [vmem:[#allocation7 + $0x18] sm:$0xff]
    %v610 = vld [vmem:[#allocation7 + $0x20] sm:$0xff]
    %v611 = vld [vmem:[#allocation7 + $0x28] sm:$0xff]
    %v612 = vld [vmem:[#allocation7 + $0x30] sm:$0xff]
    %v613 = vld [vmem:[#allocation7 + $0x38] sm:$0xff]
    %v614 = vld [vmem:[#allocation7 + $0x40] sm:$0xff]
    %v615 = vld [vmem:[#allocation7 + $0x48] sm:$0xff]
    %v616 = vld [vmem:[#allocation7 + $0x50] sm:$0xff]
    %v617 = vld [vmem:[#allocation7 + $0x58] sm:$0xff]
    %v618 = vld [vmem:[#allocation7 + $0x60] sm:$0xff]
    %v619 = vld [vmem:[#allocation7 + $0x68] sm:$0xff]
    %v620 = vld [vmem:[#allocation7 + $0x70] sm:$0xff]
    %v621 = vld [vmem:[#allocation7 + $0x78] sm:$0xff]
    %622 = vmatprep.subr.mxu0 0.0
    %623 = vmatpush1.msra.mxu0 %v621
    %624 = vmatprep.subr.mxu0 0.0
    %625 = vmatpush1.msra.mxu0 %v620
    %626 = vmatprep.subr.mxu0 0.0
    %627 = vmatpush1.msra.mxu0 %v619
    %628 = vmatprep.subr.mxu0 0.0
    %629 = vmatpush1.msra.mxu0 %v618
    %630 = vmatprep.subr.mxu0 0.0
    %631 = vmatpush1.msra.mxu0 %v617
    %632 = vmatprep.subr.mxu0 0.0
    %633 = vmatpush1.msra.mxu0 %v616
    %634 = vmatprep.subr.mxu0 0.0
    %635 = vmatpush1.msra.mxu0 %v615
    %636 = vmatprep.subr.mxu0 0.0
    %637 = vmatpush1.msra.mxu0 %v614
    %638 = vmatprep.subr.mxu0 0.0
    %639 = vmatpush1.msra.mxu0 %v613
    %640 = vmatprep.subr.mxu0 0.0
    %641 = vmatpush1.msra.mxu0 %v612
    %642 = vmatprep.subr.mxu0 0.0
    %643 = vmatpush1.msra.mxu0 %v611
    %644 = vmatprep.subr.mxu0 0.0
    %645 = vmatpush1.msra.mxu0 %v610
    %646 = vmatprep.subr.mxu0 0.0
    %647 = vmatpush1.msra.mxu0 %v609
    %648 = vmatprep.subr.mxu0 0.0
    %649 = vmatpush1.msra.mxu0 %v608
    %650 = vmatprep.subr.mxu0 0.0
    %651 = vmatpush1.msra.mxu0 %v607
    %652 = vmatprep.subr.mxu0 0.0
    %653 = vmatpush1.msra.mxu0 %v606
    %654 = vmatprep.subr.mxu0 0.0
    %655 = vmatpush2.msra.mxu0 0.0
    %656 = vmatprep.subr.mxu0 0.0
    %657 = vmatpush2.msra.mxu0 0.0
    %658 = vmatprep.subr.mxu0 0.0
    %659 = vmatpush2.msra.mxu0 0.0
    %660 = vmatprep.subr.mxu0 0.0
    %661 = vmatpush2.msra.mxu0 0.0
    %662 = vmatprep.subr.mxu0 0.0
    %663 = vmatpush2.msra.mxu0 0.0
    %664 = vmatprep.subr.mxu0 0.0
    %665 = vmatpush2.msra.mxu0 0.0
    %666 = vmatprep.subr.mxu0 0.0
    %667 = vmatpush2.msra.mxu0 0.0
    %668 = vmatprep.subr.mxu0 0.0
    %669 = vmatpush2.msra.mxu0 0.0
    %670 = vmatprep.subr.mxu0 0.0
    %671 = vmatpush2.msra.mxu0 0.0
    %672 = vmatprep.subr.mxu0 0.0
    %673 = vmatpush2.msra.mxu0 0.0
    %674 = vmatprep.subr.mxu0 0.0
    %675 = vmatpush2.msra.mxu0 0.0
    %676 = vmatprep.subr.mxu0 0.0
    %677 = vmatpush2.msra.mxu0 0.0
    %678 = vmatprep.subr.mxu0 0.0
    %679 = vmatpush2.msra.mxu0 0.0
    %680 = vmatprep.subr.mxu0 0.0
    %681 = vmatpush2.msra.mxu0 0.0
    %682 = vmatprep.subr.mxu0 0.0
    %683 = vmatpush2.msra.mxu0 0.0
    %684 = vmatprep.subr.mxu0 0.0
    %685 = vmatpush2.msra.mxu0 0.0
    %686 = vmatprep.mubr.f32.mxu0 0.0
    %687 = vmatmul.mubr.f32.gmra.mxu0 %v530
    %v688 = vpop.f32.mrf.mxu0
    %v689 = vadd.f32 0.0, %v688
    %v690 = vpop.f32.mrf.mxu0
    %691 = vmatprep.mubr.f32.mxu0 0.0
    %692 = vmatmul.mubr.f32.gmra.mxu0 %v603
    %v693 = vpop.f32.mrf.mxu0
    %v694 = vadd.f32 0.0, %v693
    %v695 = vpop.f32.mrf.mxu0
    %696 = vdwg.mxu0
    %v697 = vadd.f32 %v93, %v689
    %v698 = vadd.f32 %v94, %v694
    %v699 = vmul.f32 %v697, %v697
    %v700 = vmul.f32 %v698, %v698
    %701 = vadd.xlane.f32.xlu0 %v699
    %v702 = vpop.xlane.xlu0 %701
    %703 = vadd.xlane.f32.xlu0 %v700
    %v704 = vpop.xlane.xlu0 %703
    %v705 = vmul.f32 %v702, 0.03125
    %v706 = vmul.f32 %v704, 0.03125
    %v707 = vadd.f32 %v705, 1e-06
    %v708 = vadd.f32 %v706, 1e-06
    %v709 = vrsqrt.pop %v707
    %v710 = vrsqrt.pop %v708
    %v711 = vmul.f32 %v697, %v709
    %v712 = vmul.f32 %v698, %v710
    %v713 = vlaneseq
    %v714 = vshrl.u32 %v713, 7
    %v715 = vsub.s32 0, %v714
    %v716 = vrot.slane %v92, %v715
    %v717 = vmul.f32 %v711, %v716
    %v718 = vmul.f32 %v712, %v716
    %v719 = vand.u32 2147483647, %v717
    %v720 = vand.u32 2147483647, %v718
    %721 = vmax.xlane.f32.xlu0 %v719
    %v722 = vpop.xlane.xlu0 %721
    %723 = vmax.xlane.f32.xlu0 %v720
    %v724 = vpop.xlane.xlu0 %723
    %v725 = vmax.f32 %v722, 1e-05
    %v726 = vmax.f32 %v724, 1e-05
    %v727 = vrcp.pop %v725
    %v728 = vrcp.pop %v726
    %v729 = vmul.f32 %v727, 127.0
    %v730 = vmul.f32 %v728, 127.0
    %v731 = vmul.f32 %v717, %v729
    %v732 = vmul.f32 %v718, %v730
    %v733 = vround.ne.pseudo %v731
    %v734 = vround.ne.pseudo %v732
    %v735 = vmax.f32 %v733, -128.0
    %v736 = vmax.f32 %v734, -128.0
    %v737 = vmin.f32 %v735, 127.0
    %v738 = vmin.f32 %v736, 127.0
    %v739 = vmul.f32 %v725, 0.007874016
    %v740 = vmul.f32 %v726, 0.007874016
    %v741 = vmul.f32 %v737, %v739
    %v742 = vmul.f32 %v738, %v740
    %v743 = vld [vmem:[#allocation8] sm:$0xff]
    %v744 = vld [vmem:[#allocation8 + $0x8] sm:$0xff]
    %v745 = vld [vmem:[#allocation8 + $0x10] sm:$0xff]
    %v746 = vld [vmem:[#allocation8 + $0x18] sm:$0xff]
    %v747 = vld [vmem:[#allocation8 + $0x20] sm:$0xff]
    %v748 = vld [vmem:[#allocation8 + $0x28] sm:$0xff]
    %v749 = vld [vmem:[#allocation8 + $0x30] sm:$0xff]
    %v750 = vld [vmem:[#allocation8 + $0x38] sm:$0xff]
    %v751 = vld [vmem:[#allocation8 + $0x40] sm:$0xff]
    %v752 = vld [vmem:[#allocation8 + $0x48] sm:$0xff]
    %v753 = vld [vmem:[#allocation8 + $0x50] sm:$0xff]
    %v754 = vld [vmem:[#allocation8 + $0x58] sm:$0xff]
    %v755 = vld [vmem:[#allocation8 + $0x60] sm:$0xff]
    %v756 = vld [vmem:[#allocation8 + $0x68] sm:$0xff]
    %v757 = vld [vmem:[#allocation8 + $0x70] sm:$0xff]
    %v758 = vld [vmem:[#allocation8 + $0x78] sm:$0xff]
    %v759 = vld [vmem:[#allocation8 + $0x80] sm:$0xff]
    %v760 = vld [vmem:[#allocation8 + $0x88] sm:$0xff]
    %v761 = vld [vmem:[#allocation8 + $0x90] sm:$0xff]
    %v762 = vld [vmem:[#allocation8 + $0x98] sm:$0xff]
    %v763 = vld [vmem:[#allocation8 + $0xa0] sm:$0xff]
    %v764 = vld [vmem:[#allocation8 + $0xa8] sm:$0xff]
    %v765 = vld [vmem:[#allocation8 + $0xb0] sm:$0xff]
    %v766 = vld [vmem:[#allocation8 + $0xb8] sm:$0xff]
    %v767 = vld [vmem:[#allocation8 + $0xc0] sm:$0xff]
    %v768 = vld [vmem:[#allocation8 + $0xc8] sm:$0xff]
    %v769 = vld [vmem:[#allocation8 + $0xd0] sm:$0xff]
    %v770 = vld [vmem:[#allocation8 + $0xd8] sm:$0xff]
    %v771 = vld [vmem:[#allocation8 + $0xe0] sm:$0xff]
    %v772 = vld [vmem:[#allocation8 + $0xe8] sm:$0xff]
    %v773 = vld [vmem:[#allocation8 + $0xf0] sm:$0xff]
    %v774 = vld [vmem:[#allocation8 + $0xf8] sm:$0xff]
    %775 = vmatprep.subr.mxu0 %v774
    %776 = vmatpush1.msra.mxu0 %v773
    %777 = vmatprep.subr.mxu0 %v772
    %778 = vmatpush1.msra.mxu0 %v771
    %779 = vmatprep.subr.mxu0 %v770
    %780 = vmatpush1.msra.mxu0 %v769
    %781 = vmatprep.subr.mxu0 %v768
    %782 = vmatpush1.msra.mxu0 %v767
    %783 = vmatprep.subr.mxu0 %v766
    %784 = vmatpush1.msra.mxu0 %v765
    %785 = vmatprep.subr.mxu0 %v764
    %786 = vmatpush1.msra.mxu0 %v763
    %787 = vmatprep.subr.mxu0 %v762
    %788 = vmatpush1.msra.mxu0 %v761
    %789 = vmatprep.subr.mxu0 %v760
    %790 = vmatpush1.msra.mxu0 %v759
    %791 = vmatprep.subr.mxu0 %v758
    %792 = vmatpush1.msra.mxu0 %v757
    %793 = vmatprep.subr.mxu0 %v756
    %794 = vmatpush1.msra.mxu0 %v755
    %795 = vmatprep.subr.mxu0 %v754
    %796 = vmatpush1.msra.mxu0 %v753
    %797 = vmatprep.subr.mxu0 %v752
    %798 = vmatpush1.msra.mxu0 %v751
    %799 = vmatprep.subr.mxu0 %v750
    %800 = vmatpush1.msra.mxu0 %v749
    %801 = vmatprep.subr.mxu0 %v748
    %802 = vmatpush1.msra.mxu0 %v747
    %803 = vmatprep.subr.mxu0 %v746
    %804 = vmatpush1.msra.mxu0 %v745
    %805 = vmatprep.subr.mxu0 %v744
    %806 = vmatpush1.msra.mxu0 %v743
    %807 = vmatprep.subr.mxu0 0.0
    %808 = vmatpush2.msra.mxu0 0.0
    %809 = vmatprep.subr.mxu0 0.0
    %810 = vmatpush2.msra.mxu0 0.0
    %811 = vmatprep.subr.mxu0 0.0
    %812 = vmatpush2.msra.mxu0 0.0
    %813 = vmatprep.subr.mxu0 0.0
    %814 = vmatpush2.msra.mxu0 0.0
    %815 = vmatprep.subr.mxu0 0.0
    %816 = vmatpush2.msra.mxu0 0.0
    %817 = vmatprep.subr.mxu0 0.0
    %818 = vmatpush2.msra.mxu0 0.0
    %819 = vmatprep.subr.mxu0 0.0
    %820 = vmatpush2.msra.mxu0 0.0
    %821 = vmatprep.subr.mxu0 0.0
    %822 = vmatpush2.msra.mxu0 0.0
    %823 = vmatprep.subr.mxu0 0.0
    %824 = vmatpush2.msra.mxu0 0.0
    %825 = vmatprep.subr.mxu0 0.0
    %826 = vmatpush2.msra.mxu0 0.0
    %827 = vmatprep.subr.mxu0 0.0
    %828 = vmatpush2.msra.mxu0 0.0
    %829 = vmatprep.subr.mxu0 0.0
    %830 = vmatpush2.msra.mxu0 0.0
    %831 = vmatprep.subr.mxu0 0.0
    %832 = vmatpush2.msra.mxu0 0.0
    %833 = vmatprep.subr.mxu0 0.0
    %834 = vmatpush2.msra.mxu0 0.0
    %835 = vmatprep.subr.mxu0 0.0
    %836 = vmatpush2.msra.mxu0 0.0
    %837 = vmatprep.subr.mxu0 0.0
    %838 = vmatpush2.msra.mxu0 0.0
    %839 = vmatprep.mubr.f32.mxu0 0.0
    %840 = vmatmul.mubr.f32.gmra.mxu0 %v741
    %v841 = vpop.f32.mrf.mxu0
    %v842 = vadd.f32 0.0, %v841
    %v843 = vpop.f32.mrf.mxu0
    %v844 = vadd.f32 0.0, %v843
    %845 = vmatprep.mubr.f32.mxu0 0.0
    %846 = vmatmul.mubr.f32.gmra.mxu0 %v742
    %v847 = vpop.f32.mrf.mxu0
    %v848 = vadd.f32 0.0, %v847
    %v849 = vpop.f32.mrf.mxu0
    %v850 = vadd.f32 0.0, %v849
    %851 = vdwg.mxu0
    %v852 = vxor.u32 %v844, 2147483648
    %v853 = vxor.u32 %v850, 2147483648
    %v854 = vmul.f32 %v852, 1.442695
    %v855 = vpow.pop %v854
    %v856 = vmul.f32 %v853, 1.442695
    %v857 = vpow.pop %v856
    %v858 = vadd.f32 %v855, 1.0
    %v859 = vadd.f32 %v857, 1.0
    %v860 = vrcp.pop %v858
    %v861 = vmul.f32 1.0, %v860
    %v862 = vrcp.pop %v859
    %v863 = vmul.f32 1.0, %v862
    %v864 = vmul.f32 %v844, %v861
    %v865 = vmul.f32 %v850, %v863
    %v866 = vmul.f32 %v842, %v864
    %v867 = vmul.f32 %v848, %v865
    %v868 = vand.u32 2147483647, %v866
    %v869 = vand.u32 2147483647, %v867
    %870 = vmax.xlane.f32.xlu0 %v868
    %v871 = vpop.xlane.xlu0 %870
    %872 = vmax.xlane.f32.xlu0 %v869
    %v873 = vpop.xlane.xlu0 %872
    %v874 = vmax.f32 %v871, 1e-05
    %v875 = vmax.f32 %v873, 1e-05
    %v876 = vrcp.pop %v874
    %v877 = vrcp.pop %v875
    %v878 = vmul.f32 %v876, 127.0
    %v879 = vmul.f32 %v877, 127.0
    %v880 = vmul.f32 %v866, %v878
    %v881 = vmul.f32 %v867, %v879
    %v882 = vround.ne.pseudo %v880
    %v883 = vround.ne.pseudo %v881
    %v884 = vmax.f32 %v882, -128.0
    %v885 = vmax.f32 %v883, -128.0
    %v886 = vmin.f32 %v884, 127.0
    %v887 = vmin.f32 %v885, 127.0
    %v888 = vmul.f32 %v874, 0.007874016
    %v889 = vmul.f32 %v875, 0.007874016
    %v890 = vmul.f32 %v886, %v888
    %v891 = vmul.f32 %v887, %v889
    %v892 = vld [vmem:[#allocation10] sm:$0xff]
    %v893 = vld [vmem:[#allocation10 + $0x8] sm:$0xff]
    %v894 = vld [vmem:[#allocation10 + $0x10] sm:$0xff]
    %v895 = vld [vmem:[#allocation10 + $0x18] sm:$0xff]
    %v896 = vld [vmem:[#allocation10 + $0x20] sm:$0xff]
    %v897 = vld [vmem:[#allocation10 + $0x28] sm:$0xff]
    %v898 = vld [vmem:[#allocation10 + $0x30] sm:$0xff]
    %v899 = vld [vmem:[#allocation10 + $0x38] sm:$0xff]
    %v900 = vld [vmem:[#allocation10 + $0x40] sm:$0xff]
    %v901 = vld [vmem:[#allocation10 + $0x48] sm:$0xff]
    %v902 = vld [vmem:[#allocation10 + $0x50] sm:$0xff]
    %v903 = vld [vmem:[#allocation10 + $0x58] sm:$0xff]
    %v904 = vld [vmem:[#allocation10 + $0x60] sm:$0xff]
    %v905 = vld [vmem:[#allocation10 + $0x68] sm:$0xff]
    %v906 = vld [vmem:[#allocation10 + $0x70] sm:$0xff]
    %v907 = vld [vmem:[#allocation10 + $0x78] sm:$0xff]
    %908 = vmatprep.subr.mxu0 0.0
    %909 = vmatpush1.msra.mxu0 %v907
    %910 = vmatprep.subr.mxu0 0.0
    %911 = vmatpush1.msra.mxu0 %v906
    %912 = vmatprep.subr.mxu0 0.0
    %913 = vmatpush1.msra.mxu0 %v905
    %914 = vmatprep.subr.mxu0 0.0
    %915 = vmatpush1.msra.mxu0 %v904
    %916 = vmatprep.subr.mxu0 0.0
    %917 = vmatpush1.msra.mxu0 %v903
    %918 = vmatprep.subr.mxu0 0.0
    %919 = vmatpush1.msra.mxu0 %v902
    %920 = vmatprep.subr.mxu0 0.0
    %921 = vmatpush1.msra.mxu0 %v901
    %922 = vmatprep.subr.mxu0 0.0
    %923 = vmatpush1.msra.mxu0 %v900
    %924 = vmatprep.subr.mxu0 0.0
    %925 = vmatpush1.msra.mxu0 %v899
    %926 = vmatprep.subr.mxu0 0.0
    %927 = vmatpush1.msra.mxu0 %v898
    %928 = vmatprep.subr.mxu0 0.0
    %929 = vmatpush1.msra.mxu0 %v897
    %930 = vmatprep.subr.mxu0 0.0
    %931 = vmatpush1.msra.mxu0 %v896
    %932 = vmatprep.subr.mxu0 0.0
    %933 = vmatpush1.msra.mxu0 %v895
    %934 = vmatprep.subr.mxu0 0.0
    %935 = vmatpush1.msra.mxu0 %v894
    %936 = vmatprep.subr.mxu0 0.0
    %937 = vmatpush1.msra.mxu0 %v893
    %938 = vmatprep.subr.mxu0 0.0
    %939 = vmatpush1.msra.mxu0 %v892
    %940 = vmatprep.subr.mxu0 0.0
    %941 = vmatpush2.msra.mxu0 0.0
    %942 = vmatprep.subr.mxu0 0.0
    %943 = vmatpush2.msra.mxu0 0.0
    %944 = vmatprep.subr.mxu0 0.0
    %945 = vmatpush2.msra.mxu0 0.0
    %946 = vmatprep.subr.mxu0 0.0
    %947 = vmatpush2.msra.mxu0 0.0
    %948 = vmatprep.subr.mxu0 0.0
    %949 = vmatpush2.msra.mxu0 0.0
    %950 = vmatprep.subr.mxu0 0.0
    %951 = vmatpush2.msra.mxu0 0.0
    %952 = vmatprep.subr.mxu0 0.0
    %953 = vmatpush2.msra.mxu0 0.0
    %954 = vmatprep.subr.mxu0 0.0
    %955 = vmatpush2.msra.mxu0 0.0
    %956 = vmatprep.subr.mxu0 0.0
    %957 = vmatpush2.msra.mxu0 0.0
    %958 = vmatprep.subr.mxu0 0.0
    %959 = vmatpush2.msra.mxu0 0.0
    %960 = vmatprep.subr.mxu0 0.0
    %961 = vmatpush2.msra.mxu0 0.0
    %962 = vmatprep.subr.mxu0 0.0
    %963 = vmatpush2.msra.mxu0 0.0
    %964 = vmatprep.subr.mxu0 0.0
    %965 = vmatpush2.msra.mxu0 0.0
    %966 = vmatprep.subr.mxu0 0.0
    %967 = vmatpush2.msra.mxu0 0.0
    %968 = vmatprep.subr.mxu0 0.0
    %969 = vmatpush2.msra.mxu0 0.0
    %970 = vmatprep.subr.mxu0 0.0
    %971 = vmatpush2.msra.mxu0 0.0
    %972 = vmatprep.mubr.f32.mxu0 0.0
    %973 = vmatmul.mubr.f32.gmra.mxu0 %v890
    %v974 = vpop.f32.mrf.mxu0
    %v975 = vadd.f32 0.0, %v974
    %v976 = vpop.f32.mrf.mxu0
    %977 = vmatprep.mubr.f32.mxu0 0.0
    %978 = vmatmul.mubr.f32.gmra.mxu0 %v891
    %v979 = vpop.f32.mrf.mxu0
    %v980 = vadd.f32 0.0, %v979
    %v981 = vpop.f32.mrf.mxu0
    %982 = vdwg.mxu0
    %v983 = vadd.f32 %v717, %v975
    %v984 = vadd.f32 %v718, %v980
    %v985 = vmul.f32 %v983, %v983
    %v986 = vmul.f32 %v984, %v984
    %987 = vadd.xlane.f32.xlu0 %v985
    %v988 = vpop.xlane.xlu0 %987
    %989 = vadd.xlane.f32.xlu0 %v986
    %v990 = vpop.xlane.xlu0 %989
    %v991 = vmul.f32 %v988, 0.03125
    %v992 = vmul.f32 %v990, 0.03125
    %v993 = vadd.f32 %v991, 1e-06
    %v994 = vadd.f32 %v992, 1e-06
    %v995 = vrsqrt.pop %v993
    %v996 = vrsqrt.pop %v994
    %v997 = vmul.f32 %v983, %v995
    %v998 = vmul.f32 %v984, %v996
    %v999 = vlaneseq
    %v1000 = vshrl.u32 %v999, 7
    %v1001 = vsub.s32 1, %v1000
    %v1002 = vrot.slane %v92, %v1001
    %v1003 = vmul.f32 %v997, %v1002
    %v1004 = vmul.f32 %v998, %v1002
    %1005 = vst [vmem:[#allocation11] sm:$0xff] %v1003
    %1006 = vst [vmem:[#allocation11 + $0x8] sm:$0xff] %v1004
    // Predicated region
    $region46: #{tpu_custom_call.1} parent=1 // pred_check
      _
    $region47: #{tpu_custom_call.1} parent=1 // pred_check_branch
      %1008 = sbr.rel (0) target = $region49
    $region48: #{tpu_custom_call.1} parent=1 // pred_region
      %s1010 = ssub.s32 256, 256
      %1011 = vsyncadd [#allocation4], %s1010
      %s1012 = sshll.u32 [#allocation11], 4
      %s1013 = int_to_ptr.vmem [resolvable:$true] %s1012
      %1018 = dma.vmem_to_hbm [thread:$0]  %s1013, 256, %s6, [#allocation4], 128, 128, 8
    $region49: #{tpu_custom_call.1} parent=1 // pred_fallthru
      _
    // Predicated region
    $region50: #{tpu_custom_call.1} parent=1 // pred_check
      _
    $region51: #{tpu_custom_call.1} parent=1 // pred_check_branch
      %1020 = sbr.rel (0) target = $region53
    $region52: #{tpu_custom_call.1} parent=1 // pred_region
      %1021 = dma.done [#allocation4], 256
    $region53: #{tpu_custom_call.1} parent=1 // pred_fallthru
      _
    %1022 = vsyncpa [#allocation3], 1
    %1023 = vsyncpa [#allocation6], 1
    %1024 = vsyncpa [#allocation9], 1
    %1025 = vsyncpa [#allocation4], 1

</llo_original>
